<compile_context>
chip_gen: v6e
topology: v6e:2x2x1
jax: 0.10.0
libtpu: 0.0.40
codegen_flags: <defaults>
</compile_context>

<pallas_src>
import jax
import jax.numpy as jnp
from jax.experimental import pallas as pl
from jax.experimental.pallas import tpu as pltpu

_LANE_W = 128            # last dim of the 2D view (lane width; multiple of 128)
_BLOCK_BYTES = 4 << 20   # ~4 MiB per block in the I/O dtype (dtype-aware rows)
_VMEM_LIMIT = 48 << 20   # safe on v5e/v6e (128 MiB phys) and v7x (64 MiB phys)


def _swish_kernel(x_ref, o_ref):
    # Pure VPU/EUP elementwise: x * sigmoid(x). Compute in f32, store in the
    # I/O dtype. Fully hidden under the HBM DMA on all generations.
    x = x_ref[...].astype(jnp.float32)
    o_ref[...] = (x * jax.nn.sigmoid(x)).astype(o_ref.dtype)


def _pick_block_rows(rows: int, itemsize: int) -> int:
    """Dtype-aware block height: ~_BLOCK_BYTES per block, >= ~8 grid steps
    when the array is big enough; single full-extent block when tiny."""
    if rows <= 64:
        # Full-extent block: exempt from the (8,128) divisibility constraint,
        # and too small for pipelining to matter anyway.
        return rows
    # Cap from the per-block byte budget (rounded down to a multiple of 8).
    max_rows = max(8, (_BLOCK_BYTES // (_LANE_W * itemsize)) // 8 * 8)
    # Aim for at least ~8 pipelined grid steps.
    target = -(-rows // 8)           # cdiv(rows, 8)
    target = -(-target // 8) * 8     # round up to a multiple of 8
    return min(max_rows, target)


@jax.jit
def swish_pallas(x: jax.Array) -> jax.Array:
    """Computes x * sigmoid(x) with a Pallas TPU kernel. Works on any shape."""
    orig_shape = x.shape
    n = x.size
    if n == 0:
        return x

    flat = x.reshape(-1)
    itemsize = x.dtype.itemsize

    # Reshape the flat view to (rows, 128). Only pad in the (rare) case where
    # n is not a multiple of 128; under jit this is one fused copy, and the
    # common case adds zero extra HBM traffic.
    rem = n % _LANE_W
    n_pad = n if rem == 0 else n + (_LANE_W - rem)
    if n_pad != n:
        flat = jnp.pad(flat, (0, n_pad - n))
    rows = n_pad // _LANE_W
    x2d = flat.reshape(rows, _LANE_W)

    block_rows = _pick_block_rows(rows, itemsize)
    grid = (pl.cdiv(rows, block_rows),)

    out2d = pl.pallas_call(
        _swish_kernel,
        out_shape=jax.ShapeDtypeStruct((rows, _LANE_W), x.dtype),
        grid=grid,
        in_specs=[pl.BlockSpec((block_rows, _LANE_W), lambda i: (i, 0))],
        out_specs=pl.BlockSpec((block_rows, _LANE_W), lambda i: (i, 0)),
        compiler_params=pltpu.CompilerParams(
            dimension_semantics=("parallel",),
            vmem_limit_bytes=_VMEM_LIMIT,
        ),
        cost_estimate=pl.CostEstimate(
            flops=4 * n_pad,
            transcendentals=n_pad,
            bytes_accessed=2 * n_pad * itemsize,
        ),
    )(x2d)

    out_flat = out2d.reshape(-1)
    if n_pad != n:
        out_flat = out_flat[:n]
    return out_flat.reshape(orig_shape)


if __name__ == "__main__":
    key = jax.random.PRNGKey(0)
    # NCHW conv-style activation shape: (N, C, H, W)
    x = jax.random.normal(key, (2, 4, 16, 16), dtype=jnp.float32)

    y = swish_pallas(x)
    jax.block_until_ready(y)

    # Reference: x * sigmoid(x) (same semantics as torch Swish forward)
    y_ref = x * jax.nn.sigmoid(x)
    assert y.shape == x.shape and y.dtype == x.dtype
    assert jnp.allclose(y, y_ref, atol=1e-5, rtol=1e-5)

    print("KERNEL_OK")
</pallas_src>

<mosaic_0001>
module attributes {stable_mosaic.version = 11 : i64} {
  func.func @_swish_kernel(%arg0: i32, %arg1: memref<16x128xf32, #tpu.memory_space<vmem>>, %arg2: memref<16x128xf32, #tpu.memory_space<vmem>>) attributes {dimension_semantics = [#tpu.dimension_semantics<parallel>], iteration_bounds = array<i64: 1>, scalar_prefetch = 0 : i64, scratch_operands = 0 : i64, tpu.core_type = #tpu.core_type<tc>, window_params = [{transform_indices = @transform_0, window_bounds = array<i64: 16, 128>}, {transform_indices = @transform_1, window_bounds = array<i64: 16, 128>}]} {
    %c0 = arith.constant 0 : index
    %c0_0 = arith.constant 0 : index
    %0 = vector.load %arg1[%c0, %c0_0] : memref<16x128xf32, #tpu.memory_space<vmem>>, vector<16x128xf32>
    %1 = arith.negf %0 : vector<16x128xf32>
    %2 = math.exp %1 : vector<16x128xf32>
    %cst = arith.constant 1.000000e+00 : f32
    %3 = vector.broadcast %cst : f32 to vector<16x128xf32>
    %4 = arith.addf %3, %2 : vector<16x128xf32>
    %5 = arith.divf %3, %4 : vector<16x128xf32>
    %6 = arith.mulf %0, %5 : vector<16x128xf32>
    %c0_1 = arith.constant 0 : index
    %c0_2 = arith.constant 0 : index
    %7 = vector.load %arg2[%c0_1, %c0_2] : memref<16x128xf32, #tpu.memory_space<vmem>>, vector<16x128xf32>
    tpu.vector_store %arg2[%c0_1, %c0_2], %6 {strides = array<i32>} : memref<16x128xf32, #tpu.memory_space<vmem>>, vector<16x128xf32>,
    return
  }
  func.func @transform_0(%arg0: i32) -> (i32, i32) {
    %c0_i32 = arith.constant 0 : i32
    %c0_i32_0 = arith.constant 0 : i32
    return %arg0, %c0_i32 : i32, i32
  }
  func.func @transform_1(%arg0: i32) -> (i32, i32) {
    %c0_i32 = arith.constant 0 : i32
    %c0_i32_0 = arith.constant 0 : i32
    return %arg0, %c0_i32 : i32, i32
  }
}

</mosaic_0001>

<llo_original>
// kernel: swish_pallas.1
$region0: #{swish_pallas.1}
  #allocation0 [shape = 'u32[]', space=smem, size = 0x4, offset = 0x4, fixed_abs, tag = 'smem constant byte address 0x4 - core index']
  #allocation1 [shape = 'u32[144,128]{1,0:T(1,128)}', space=vmem, size = 0x12000, scoped, tag = 'internal scratch']
  %s0 = inlined_call_operand.vmem [shape: f32[16,128], index: 0, kind: input, shape index: {}]
  %s1 = inlined_call_operand.vmem [shape: f32[16,128], index: 1, kind: output, shape index: {}]
  %s2 = sld [smem:[#allocation0]]
  $region14: #{swish_pallas.1} parent=0
    _
  %s4 = ssub.s32 1, %s2
  %s5 = scalar_select 0, %s4, %s2
  // Predicated region
  $region2: #{swish_pallas.1} parent=0 // pred_check
    _
  $region3: #{swish_pallas.1} parent=0 // pred_check_branch
    %7 = sbr.rel (0) target = $region5
  $region4: #{swish_pallas.1} parent=0 // pred_region
    _
  $region5: #{swish_pallas.1} parent=0 // pred_fallthru
    _
  %v8 = vld [vmem:[%s0] sm:$0xff]
  %v9 = vld [vmem:[%s0 + $0x8] sm:$0xff]
  %v10 = vxor.u32 %v8, 2147483648
  %v11 = vxor.u32 %v9, 2147483648
  %v12 = vmul.f32 %v10, 1.442695
  %v13 = vpow.pop %v12
  %v14 = vmul.f32 %v11, 1.442695
  %v15 = vpow.pop %v14
  %v16 = vadd.f32 %v13, 1.0
  %v17 = vadd.f32 %v15, 1.0
  %v18 = vrcp.pop %v16
  %v19 = vmul.f32 1.0, %v18
  %v20 = vrcp.pop %v17
  %v21 = vmul.f32 1.0, %v20
  %v22 = vmul.f32 %v8, %v19
  %v23 = vmul.f32 %v9, %v21
  %24 = vst [vmem:[%s1] sm:$0xff] %v22
  %25 = vst [vmem:[%s1 + $0x8] sm:$0xff] %v23
  // Predicated region
  $region6: #{swish_pallas.1} parent=0 // pred_check
    _
  $region7: #{swish_pallas.1} parent=0 // pred_check_branch
    %27 = sbr.rel (0) target = $region9
  $region8: #{swish_pallas.1} parent=0 // pred_region
    _
  $region9: #{swish_pallas.1} parent=0 // pred_fallthru
    _
  // Predicated region
  $region10: #{swish_pallas.1} parent=0 // pred_check
    _
  $region11: #{swish_pallas.1} parent=0 // pred_check_branch
    %29 = sbr.rel (0) target = $region13
  $region12: #{swish_pallas.1} parent=0 // pred_region
    _
  $region13: #{swish_pallas.1} parent=0 // pred_fallthru
    _

</llo_original>
